<compile_context>
chip_gen: v6e
topology: v6e:2x2x1
jax: 0.10.0
libtpu: 0.0.40
codegen_flags: <defaults>
</compile_context>

<pallas_src>
import jax
import jax.numpy as jnp
from jax.experimental import pallas as pl
from jax.experimental.pallas import tpu as pltpu


def _cbam_kernel(x_ref, w1_ref, w2_ref, amat_ref, bias_ref, o_ref):
    """Process TB samples per grid step.

    x_ref    : VMEM (TB, c, hw)     - input tile, spatial flattened (lane axis)
    w1_ref   : VMEM (c, cr)         - SE 1x1 conv #1 weight, transposed
    w2_ref   : VMEM (cr, c)         - SE 1x1 conv #2 weight, transposed
    amat_ref : VMEM (2*hw, hw) bf16 - spatial 'same' conv as one dense matrix
                                      (rows 0..hw-1: max channel, hw..2hw-1: mean)
    bias_ref : SMEM (1,)            - spatial conv bias
    o_ref    : VMEM (TB, c, hw)
    """
    xf = x_ref[...].astype(jnp.float32)                       # (TB, c, hw)

    # ---- ChannelAttention: global max/avg pool, shared SE MLP (ONE dot pair) --
    maxp = jnp.max(xf, axis=-1)                                # (TB, c)
    avgp = jnp.mean(xf, axis=-1)                               # (TB, c)
    tb = maxp.shape[0]
    pools = jnp.concatenate([maxp, avgp], axis=0)              # (2*TB, c)

    hdn = jnp.maximum(
        jnp.dot(pools, w1_ref[...], preferred_element_type=jnp.float32), 0.0)
    se = jnp.dot(hdn, w2_ref[...], preferred_element_type=jnp.float32)  # (2*TB, c)
    ca = jax.nn.sigmoid(se[:tb] + se[tb:])                     # (TB, c)

    # Re-read x_ref here (and below for the residual) so the f32 upcast need not
    # stay live across the matmuls - matters for bf16 inputs at larger TB.
    out1 = x_ref[...].astype(jnp.float32) * ca[:, :, None]     # (TB, c, hw)

    # ---- SpatialAttention: channel max/mean -> fused 'same' conv (ONE matmul) --
    cmax = jnp.max(out1, axis=1)                               # (TB, hw)
    cmean = jnp.mean(out1, axis=1)                             # (TB, hw)
    cat = jnp.concatenate([cmax, cmean], axis=-1)              # (TB, 2*hw)
    logits = jnp.dot(cat.astype(jnp.bfloat16), amat_ref[...],
                     preferred_element_type=jnp.float32) + bias_ref[0]
    sa = jax.nn.sigmoid(logits)                                # (TB, hw)

    # ---- gate + residual (fresh x_ref read for the residual) ----
    o_ref[...] = (out1 * sa[:, None, :]
                  + x_ref[...].astype(jnp.float32)).astype(o_ref.dtype)


def _spatial_conv_as_matrix(conv_w, h, w):
    """Fold a (1, 2, k, k) stride-1 'same' conv into a dense (2*h*w, h*w) matrix.

    out[yo, xo] = sum_{c, yi, xi} A[c, (yi, xi), (yo, xo)] * in[c, yi, xi]
    with A[c, (yi, xi), (yo, xo)] = W[c, yi - yo + p, xi - xo + p] (0 outside).
    Returned as bf16 (the MXU is fed bf16 anyway; halves VMEM/HBM footprint).
    """
    wk = jnp.asarray(conv_w, jnp.float32)[0]                   # (2, k, k)
    k = wk.shape[-1]
    p = (k - 1) // 2
    yi = jnp.arange(h)
    yo = jnp.arange(h)
    xi = jnp.arange(w)
    xo = jnp.arange(w)
    dy = yi[:, None] - yo[None, :] + p                         # (h, h)
    dx = xi[:, None] - xo[None, :] + p                         # (w, w)
    valid = (((dy >= 0) & (dy < k))[:, :, None, None]
             & ((dx >= 0) & (dx < k))[None, None, :, :])       # (h, h, w, w)
    dyc = jnp.clip(dy, 0, k - 1)
    dxc = jnp.clip(dx, 0, k - 1)
    a = wk[:, dyc[:, :, None, None], dxc[None, None, :, :]]    # (2, h, h, w, w)
    a = a * valid.astype(jnp.float32)
    # axes (c, yi, yo, xi, xo) -> (c, yi, xi, yo, xo): rows=(yi,xi), cols=(yo,xo)
    a = a.transpose(0, 1, 3, 2, 4).reshape(2 * h * w, h * w)
    return a.astype(jnp.bfloat16)


def _vmem_limit_bytes():
    """Pick a safe explicit scoped-VMEM limit for the current chip generation."""
    try:
        vmem_phys = pltpu.get_tpu_info().vmem_capacity_bytes
    except Exception:  # conservative fallback (v7x-sized)
        vmem_phys = 64 * 1024 * 1024
    # v5e/v6e (128 MiB phys) -> 64 MiB; v7x (64 MiB phys) -> 32 MiB.
    return int(min(vmem_phys // 2, 64 * 1024 * 1024))


def _pick_batch_tile(b, c, hw, itemsize, fixed_bytes, vmem_limit):
    """Largest divisor of b whose per-step footprint fits the VMEM budget,
    while keeping at least 2 grid steps whenever b >= 2 (megacore + overlap)."""
    budget = max(int(vmem_limit * 0.75) - int(fixed_bytes), 1 << 20)
    # double-buffered in + out tiles plus f32 temporaries (out1, gated product,
    # residual read).
    per_sample = 4 * c * hw * max(int(itemsize), 4) + 3 * c * hw * 4
    cap = max(1, budget // per_sample)
    if b >= 2:
        cap = min(cap, b // 2)      # never collapse the grid to a single step
    cap = max(1, cap)
    tb = 1
    for d in range(1, b + 1):
        if b % d == 0 and d <= cap:
            tb = d
    return tb


def cbam_block(x, se_w1, se_w2, conv_w, conv_b):
    """CBAM forward.

    x      : (b, c, h, w) NCHW
    se_w1  : (c//reduction, c)   - ChannelAttention.se[0] weight (1x1 conv)
    se_w2  : (c, c//reduction)   - ChannelAttention.se[2] weight (1x1 conv)
    conv_w : (1, 2, k, k)        - SpatialAttention.conv weight (k odd)
    conv_b : (1,)                - SpatialAttention.conv bias
    """
    b, c, h, w = x.shape
    cr = se_w1.shape[0]
    assert se_w1.shape == (cr, c) and se_w2.shape == (c, cr)
    k = conv_w.shape[-1]
    assert k % 2 == 1, "even kernel_size with 'same' padding not supported"
    hw = h * w

    x_r = x.reshape(b, c, hw)
    w1t = jnp.asarray(se_w1, jnp.float32).T                    # (c, cr)
    w2t = jnp.asarray(se_w2, jnp.float32).T                    # (cr, c)
    amat = _spatial_conv_as_matrix(conv_w, h, w)               # (2*hw, hw) bf16
    bias = jnp.asarray(conv_b, jnp.float32).reshape(1)

    vmem_limit = _vmem_limit_bytes()
    # Grid-invariant operands are single-buffered -> count them once.
    fixed_bytes = 2 * hw * hw * 2 + 2 * c * cr * 4
    tb = _pick_batch_tile(b, c, hw, x.dtype.itemsize, fixed_bytes, vmem_limit)
    grid = (b // tb,)

    out = pl.pallas_call(
        _cbam_kernel,
        out_shape=jax.ShapeDtypeStruct((b, c, hw), x.dtype),
        grid=grid,
        in_specs=[
            pl.BlockSpec((tb, c, hw), lambda i: (i, 0, 0)),
            # Grid-invariant operands: no need for double-buffering.
            pl.BlockSpec((c, cr), lambda i: (0, 0),
                         pipeline_mode=pl.Buffered(1)),
            pl.BlockSpec((cr, c), lambda i: (0, 0),
                         pipeline_mode=pl.Buffered(1)),
            pl.BlockSpec((2 * hw, hw), lambda i: (0, 0),
                         pipeline_mode=pl.Buffered(1)),
            pl.BlockSpec(memory_space=pltpu.MemorySpace.SMEM),
        ],
        out_specs=pl.BlockSpec((tb, c, hw), lambda i: (i, 0, 0)),
        compiler_params=pltpu.CompilerParams(
            dimension_semantics=("parallel",),
            vmem_limit_bytes=vmem_limit),
    )(x_r, w1t, w2t, amat, bias)
    return out.reshape(b, c, h, w)


def _reference_cbam(x, se_w1, se_w2, conv_w, conv_b):
    """Pure-JAX transcription of the PyTorch CBAMBlock.forward, for checking."""
    hi = jax.lax.Precision.HIGHEST
    maxp = jnp.max(x, axis=(2, 3), keepdims=True)
    avgp = jnp.mean(x, axis=(2, 3), keepdims=True)

    def se(p):
        hdn = jnp.einsum('bcij,oc->boij', p, se_w1, precision=hi)
        hdn = jnp.maximum(hdn, 0.0)
        return jnp.einsum('brij,or->boij', hdn, se_w2, precision=hi)

    ca = jax.nn.sigmoid(se(maxp) + se(avgp))
    out = x * ca
    cmax = jnp.max(out, axis=1, keepdims=True)
    cmean = jnp.mean(out, axis=1, keepdims=True)
    cat = jnp.concatenate([cmax, cmean], axis=1)               # (b, 2, h, w)
    k = conv_w.shape[-1]
    p = (k - 1) // 2
    sa_logits = jax.lax.conv_general_dilated(
        cat, conv_w, window_strides=(1, 1), padding=((p, p), (p, p)),
        dimension_numbers=('NCHW', 'OIHW', 'NCHW'), precision=hi)
    sa = jax.nn.sigmoid(sa_logits + conv_b.reshape(1, 1, 1, 1))
    return out * sa + x


if __name__ == "__main__":
    key = jax.random.PRNGKey(0)
    kx, k1, k2, k3, k4 = jax.random.split(key, 5)

    b, c, h, w = 2, 32, 16, 16
    reduction = 16
    kernel_size = 49          # CBAMBlock default
    cr = c // reduction

    x = jax.random.normal(kx, (b, c, h, w), dtype=jnp.float32)
    se_w1 = jax.random.normal(k1, (cr, c), dtype=jnp.float32) / jnp.sqrt(c)
    se_w2 = jax.random.normal(k2, (c, cr), dtype=jnp.float32) / jnp.sqrt(cr)
    conv_w = 0.02 * jax.random.normal(
        k3, (1, 2, kernel_size, kernel_size), dtype=jnp.float32)
    conv_b = 0.1 * jax.random.normal(k4, (1,), dtype=jnp.float32)

    out = cbam_block(x, se_w1, se_w2, conv_w, conv_b)
    out = jax.block_until_ready(out)

    ref = _reference_cbam(x, se_w1, se_w2, conv_w, conv_b)
    assert out.shape == (b, c, h, w)
    err = float(jnp.max(jnp.abs(out - ref)))
    assert jnp.allclose(out, ref, rtol=1e-2, atol=1e-2), err

    print("KERNEL_OK")
</pallas_src>

<mosaic_0001>
module attributes {stable_mosaic.version = 11 : i64} {
  func.func @_cbam_kernel(%arg0: i32, %arg1: memref<1x32x256xf32, #tpu.memory_space<vmem>>, %arg2: memref<32x2xf32, #tpu.memory_space<vmem>>, %arg3: memref<2x32xf32, #tpu.memory_space<vmem>>, %arg4: memref<512x256xbf16, #tpu.memory_space<vmem>>, %arg5: memref<1xf32, #tpu.memory_space<smem>>, %arg6: memref<1x32x256xf32, #tpu.memory_space<vmem>>) attributes {dimension_semantics = [#tpu.dimension_semantics<parallel>], iteration_bounds = array<i64: 2>, scalar_prefetch = 0 : i64, scratch_operands = 0 : i64, tpu.core_type = #tpu.core_type<tc>, window_params = [{transform_indices = @transform_0, window_bounds = array<i64: 1, 32, 256>}, {pipeline_mode = #tpu.pipeline_mode<synchronous>, transform_indices = @transform_1, window_bounds = array<i64: 32, 2>}, {pipeline_mode = #tpu.pipeline_mode<synchronous>, transform_indices = @transform_2, window_bounds = array<i64: 2, 32>}, {pipeline_mode = #tpu.pipeline_mode<synchronous>, transform_indices = @transform_3, window_bounds = array<i64: 512, 256>}, {transform_indices = @transform_4, window_bounds = array<i64: 1>}, {transform_indices = @transform_5, window_bounds = array<i64: 1, 32, 256>}]} {
    %c0 = arith.constant 0 : index
    %c0_0 = arith.constant 0 : index
    %c0_1 = arith.constant 0 : index
    %0 = vector.load %arg1[%c0, %c0_0, %c0_1] : memref<1x32x256xf32, #tpu.memory_space<vmem>>, vector<1x32x256xf32>
    %cst = arith.constant dense<0xFF800000> : vector<1x32xf32>
    %1 = vector.multi_reduction <maximumf>, %0, %cst [2] : vector<1x32x256xf32> to vector<1x32xf32>
    %cst_2 = arith.constant dense<0.000000e+00> : vector<1x32xf32>
    %2 = vector.multi_reduction <add>, %0, %cst_2 [2] : vector<1x32x256xf32> to vector<1x32xf32>
    %cst_3 = arith.constant 2.560000e+02 : f32
    %3 = vector.broadcast %cst_3 : f32 to vector<1x32xf32>
    %4 = arith.divf %2, %3 : vector<1x32xf32>
    %5 = tpu.concatenate %1, %4 in 0 : vector<1x32xf32>, vector<1x32xf32> -> vector<2x32xf32>
    %c0_4 = arith.constant 0 : index
    %c0_5 = arith.constant 0 : index
    %6 = vector.load %arg2[%c0_4, %c0_5] : memref<32x2xf32, #tpu.memory_space<vmem>>, vector<32x2xf32>
    %cst_6 = arith.constant dense<0.000000e+00> : vector<2x2xf32>
    %7 = tpu.matmul %5, %6, %cst_6 {dimension_numbers = #tpu.dot_dimension_numbers<[1], [0], [0], [1], [0, 0, 1, 1], [], []>} : vector<2x32xf32>, vector<32x2xf32>, vector<2x2xf32> -> vector<2x2xf32>
    %cst_7 = arith.constant 0.000000e+00 : f32
    %8 = vector.broadcast %cst_7 : f32 to vector<2x2xf32>
    %9 = arith.maximumf %7, %8 : vector<2x2xf32>
    %c0_8 = arith.constant 0 : index
    %c0_9 = arith.constant 0 : index
    %10 = vector.load %arg3[%c0_8, %c0_9] : memref<2x32xf32, #tpu.memory_space<vmem>>, vector<2x32xf32>
    %cst_10 = arith.constant dense<0.000000e+00> : vector<2x32xf32>
    %11 = tpu.matmul %9, %10, %cst_10 {dimension_numbers = #tpu.dot_dimension_numbers<[1], [0], [0], [1], [0, 0, 1, 1], [], []>} : vector<2x2xf32>, vector<2x32xf32>, vector<2x32xf32> -> vector<2x32xf32>
    %12 = vector.extract_strided_slice %11 {offsets = [0, 0], sizes = [1, 32], strides = [1, 1]} : vector<2x32xf32> to vector<1x32xf32>
    %13 = vector.extract_strided_slice %11 {offsets = [1, 0], sizes = [1, 32], strides = [1, 1]} : vector<2x32xf32> to vector<1x32xf32>
    %14 = arith.addf %12, %13 : vector<1x32xf32>
    %15 = arith.negf %14 : vector<1x32xf32>
    %16 = math.exp %15 : vector<1x32xf32>
    %cst_11 = arith.constant 1.000000e+00 : f32
    %17 = vector.broadcast %cst_11 : f32 to vector<1x32xf32>
    %18 = arith.addf %17, %16 : vector<1x32xf32>
    %19 = arith.divf %17, %18 : vector<1x32xf32>
    %c0_12 = arith.constant 0 : index
    %c0_13 = arith.constant 0 : index
    %c0_14 = arith.constant 0 : index
    %20 = vector.load %arg1[%c0_12, %c0_13, %c0_14] : memref<1x32x256xf32, #tpu.memory_space<vmem>>, vector<1x32x256xf32>
    %21 = vector.shape_cast %19 : vector<1x32xf32> to vector<1x32x1xf32>
    %22 = vector.broadcast %21 : vector<1x32x1xf32> to vector<1x32x256xf32>
    %23 = arith.mulf %20, %22 : vector<1x32x256xf32>
    %cst_15 = arith.constant dense<0xFF800000> : vector<1x256xf32>
    %24 = vector.multi_reduction <maximumf>, %23, %cst_15 [1] : vector<1x32x256xf32> to vector<1x256xf32>
    %cst_16 = arith.constant dense<0.000000e+00> : vector<1x256xf32>
    %25 = vector.multi_reduction <add>, %23, %cst_16 [1] : vector<1x32x256xf32> to vector<1x256xf32>
    %cst_17 = arith.constant 3.200000e+01 : f32
    %26 = vector.broadcast %cst_17 : f32 to vector<1x256xf32>
    %27 = arith.divf %25, %26 : vector<1x256xf32>
    %28 = tpu.concatenate %24, %27 in 1 : vector<1x256xf32>, vector<1x256xf32> -> vector<1x512xf32>
    %29 = arith.truncf %28 : vector<1x512xf32> to vector<1x512xbf16>
    %c0_18 = arith.constant 0 : index
    %c0_19 = arith.constant 0 : index
    %30 = vector.load %arg4[%c0_18, %c0_19] : memref<512x256xbf16, #tpu.memory_space<vmem>>, vector<512x256xbf16>
    %cst_20 = arith.constant dense<0.000000e+00> : vector<1x256xf32>
    %31 = tpu.matmul %29, %30, %cst_20 {dimension_numbers = #tpu.dot_dimension_numbers<[1], [0], [0], [1], [0, 0, 1, 1], [], []>} : vector<1x512xbf16>, vector<512x256xbf16>, vector<1x256xf32> -> vector<1x256xf32>
    %c0_21 = arith.constant 0 : index
    %32 = memref.load %arg5[%c0_21] : memref<1xf32, #tpu.memory_space<smem>>
    %33 = vector.broadcast %32 : f32 to vector<1x256xf32>
    %34 = arith.addf %31, %33 : vector<1x256xf32>
    %35 = arith.negf %34 : vector<1x256xf32>
    %36 = math.exp %35 : vector<1x256xf32>
    %cst_22 = arith.constant 1.000000e+00 : f32
    %37 = vector.broadcast %cst_22 : f32 to vector<1x256xf32>
    %38 = arith.addf %37, %36 : vector<1x256xf32>
    %39 = arith.divf %37, %38 : vector<1x256xf32>
    %40 = vector.shape_cast %39 : vector<1x256xf32> to vector<1x1x256xf32>
    %41 = vector.broadcast %40 : vector<1x1x256xf32> to vector<1x32x256xf32>
    %42 = arith.mulf %23, %41 : vector<1x32x256xf32>
    %c0_23 = arith.constant 0 : index
    %c0_24 = arith.constant 0 : index
    %c0_25 = arith.constant 0 : index
    %43 = vector.load %arg1[%c0_23, %c0_24, %c0_25] : memref<1x32x256xf32, #tpu.memory_space<vmem>>, vector<1x32x256xf32>
    %44 = arith.addf %42, %43 : vector<1x32x256xf32>
    %c0_26 = arith.constant 0 : index
    %c0_27 = arith.constant 0 : index
    %c0_28 = arith.constant 0 : index
    %45 = vector.load %arg6[%c0_26, %c0_27, %c0_28] : memref<1x32x256xf32, #tpu.memory_space<vmem>>, vector<1x32x256xf32>
    tpu.vector_store %arg6[%c0_26, %c0_27, %c0_28], %44 {strides = array<i32>} : memref<1x32x256xf32, #tpu.memory_space<vmem>>, vector<1x32x256xf32>,
    return
  }
  func.func @transform_0(%arg0: i32) -> (i32, i32, i32) {
    %c0_i32 = arith.constant 0 : i32
    %c0_i32_0 = arith.constant 0 : i32
    %c0_i32_1 = arith.constant 0 : i32
    return %arg0, %c0_i32, %c0_i32_0 : i32, i32, i32
  }
  func.func @transform_1(%arg0: i32) -> (i32, i32) {
    %c0_i32 = arith.constant 0 : i32
    %c0_i32_0 = arith.constant 0 : i32
    %c0_i32_1 = arith.constant 0 : i32
    return %c0_i32, %c0_i32_0 : i32, i32
  }
  func.func @transform_2(%arg0: i32) -> (i32, i32) {
    %c0_i32 = arith.constant 0 : i32
    %c0_i32_0 = arith.constant 0 : i32
    %c0_i32_1 = arith.constant 0 : i32
    return %c0_i32, %c0_i32_0 : i32, i32
  }
  func.func @transform_3(%arg0: i32) -> (i32, i32) {
    %c0_i32 = arith.constant 0 : i32
    %c0_i32_0 = arith.constant 0 : i32
    %c0_i32_1 = arith.constant 0 : i32
    return %c0_i32, %c0_i32_0 : i32, i32
  }
  func.func @transform_4(%arg0: i32) -> i32 {
    %c0_i32 = arith.constant 0 : i32
    %c0_i32_0 = arith.constant 0 : i32
    return %c0_i32 : i32
  }
  func.func @transform_5(%arg0: i32) -> (i32, i32, i32) {
    %c0_i32 = arith.constant 0 : i32
    %c0_i32_0 = arith.constant 0 : i32
    %c0_i32_1 = arith.constant 0 : i32
    return %arg0, %c0_i32, %c0_i32_0 : i32, i32, i32
  }
}

</mosaic_0001>

<llo_original>
// kernel: tpu_custom_call.1
$region0: #{tpu_custom_call.1}
  #allocation0 [shape = 'u32[]', space=smem, size = 0x4, offset = 0x4, fixed_abs, tag = 'smem constant byte address 0x4 - core index']
  #allocation1 [shape = 'u32[144,128]{1,0:T(1,128)}', space=vmem, size = 0x12000, scoped, tag = 'internal scratch']
  #allocation2 [shape = 'f32[1]{0:T(128)S(6)}', space=smem, size = 0x200, scoped, tag = 'scoped memory for tpu_custom_call.1']
  %s0 = inlined_call_operand.hbm [shape: f32[2,32,256], index: 0, kind: input, shape index: {}]
  %s1 = inlined_call_operand.vmem [shape: f32[32,2], index: 1, kind: input, shape index: {}]
  %s2 = inlined_call_operand.vmem [shape: f32[2,32], index: 2, kind: input, shape index: {}]
  %s3 = inlined_call_operand.hbm [shape: bf16[512,256], index: 3, kind: input, shape index: {}]
  %s4 = inlined_call_operand.<no memory space> [shape: f32[1], index: 4, kind: input, shape index: {}]
  %s5 = inlined_call_operand.hbm [shape: f32[2,32,256], index: 5, kind: output, shape index: {}]
  %s6 = sld [smem:[#allocation0]]
  $region61: #{tpu_custom_call.1} parent=0
    _
  %s8 = ssub.s32 1, %s6
  %s9 = scalar_select 0, %s8, %s6
  %10 = sst [smem:[#allocation2]] %s4
  $region1: #{tpu_custom_call.1} parent=0
    #allocation3 [shape = 'u8[65536]{0}', space=vmem, size = 0x10000, scoped, tag = 'input window, operand 0']
    #allocation4 [shape = 's32[2]{0}', space=sflag, size = 0x8, scoped, tag = 'scoped memory for tpu_custom_call.1']
    #allocation5 [shape = 's32[2]{0}', space=sflag, size = 0x8, scoped, tag = 'scoped memory for tpu_custom_call.1']
    #allocation6 [shape = 'u8[262144]{0}', space=vmem, size = 0x40000, scoped, tag = 'input window, operand 3, single buffered']
    #allocation7 [shape = 's32[1]{0}', space=sflag, size = 0x4, scoped, tag = 'scoped memory for tpu_custom_call.1']
    #allocation8 [shape = 'u8[65536]{0}', space=vmem, size = 0x10000, scoped, tag = 'output window, operand 0']
    %11 = vsyncpa [#allocation4], 0
    %s12 = scalar_lea.sflag [#allocation4], 1
    %13 = vsyncpa %s12, 0
    %14 = vsyncpa [#allocation7], 0
    %15 = vsyncpa [#allocation5], 0
    %s16 = scalar_lea.sflag [#allocation5], 1
    %17 = vsyncpa %s16, 0
    loop: start=0, step=1, limit=4
    $region2: #{tpu_custom_call.1} parent=1 // loop_pre_header
      _
    $region3: #{tpu_custom_call.1} parent=1 // loop_header
      %s19 = sphi 0, %s23
      %p20 = scmp.ge.s32.totalorder %s19, 4
      %s29 = sphi 0, %s31
      %s32 = sphi 0, %s29
      %s33 = sphi 0, %s32
      %s49 = sphi 0, %s33
      %s53 = sphi 0, %s53
      %s55 = sphi 0, %s53
      %s56 = sphi 0, %s55
      %s70 = sphi 0, %s56
      %s74 = sphi 0, %s74
      %s76 = sphi 0, %s74
      %s77 = sphi 0, %s76
      %s91 = sphi 0, %s77
      %s95 = sphi 0, %s95
      %s97 = sphi 0, %s95
      %s98 = sphi 0, %s97
      %s112 = sphi 0, %s98
      %s116 = sphi 0, %s116
      %s118 = sphi 0, %s116
      %s119 = sphi 0, %s118
      %s133 = sphi 0, %s119
      %s139 = sphi 0, %s141
      %s142 = sphi 0, %s139
      %s143 = sphi 0, %s142
      %s159 = sphi 0, %s143
    $region4: #{tpu_custom_call.1} parent=1 // loop_header_branch
      %22 = sbr.rel (%p20) target = $region8
    $region5: #{tpu_custom_call.1} parent=1 // loop_body
      %s24 = ssub.s32 %s19, 1
      %s25 = ssub.s32 %s19, 2
      %s26 = sadd.s32 %s19, 1
      %s27 = ssub.s32 %s19, %s26
      %p28 = scmp.eq.s32.totalorder %s27, 0
      %s30 = sadd.s32 %s29, 1
      %s31 = scalar_select %p28, %s29, %s30
      %p34 = pneg %p28
      %p35 = scmp.eq.s32.totalorder %s19, 1
      %p36 = por %p34, %p35
      %p37 = scmp.ne.s32.totalorder %s29, %s32
      %p38 = scmp.eq.s32.totalorder %s19, 0
      %p39 = por %p37, %p38
      %p40 = scmp.ne.s32.totalorder %s29, %s32
      %p41 = scmp.eq.s32.totalorder %s24, 1
      %p42 = por %p40, %p41
      %p43 = scmp.ne.s32.totalorder %s32, %s33
      %p44 = scmp.eq.s32.totalorder %s24, 0
      %p45 = por %p43, %p44
      %p46 = scmp.ne.s32.totalorder %s32, %s33
      %p47 = scmp.eq.s32.totalorder %s25, 1
      %p48 = por %p46, %p47
      %p50 = scmp.ne.s32.totalorder %s33, %s49
      %p51 = scmp.eq.s32.totalorder %s25, 0
      %p52 = por %p50, %p51
      %s54 = sadd.s32 %s53, 1
      %p57 = scmp.eq.s32.totalorder %s19, 1
      %p58 = scmp.ne.s32.totalorder %s53, %s55
      %p59 = scmp.eq.s32.totalorder %s19, 0
      %p60 = por %p58, %p59
      %p61 = scmp.ne.s32.totalorder %s53, %s55
      %p62 = scmp.eq.s32.totalorder %s24, 1
      %p63 = por %p61, %p62
      %p64 = scmp.ne.s32.totalorder %s55, %s56
      %p65 = scmp.eq.s32.totalorder %s24, 0
      %p66 = por %p64, %p65
      %p67 = scmp.ne.s32.totalorder %s55, %s56
      %p68 = scmp.eq.s32.totalorder %s25, 1
      %p69 = por %p67, %p68
      %p71 = scmp.ne.s32.totalorder %s56, %s70
      %p72 = scmp.eq.s32.totalorder %s25, 0
      %p73 = por %p71, %p72
      %s75 = sadd.s32 %s74, 1
      %p78 = scmp.eq.s32.totalorder %s19, 1
      %p79 = scmp.ne.s32.totalorder %s74, %s76
      %p80 = scmp.eq.s32.totalorder %s19, 0
      %p81 = por %p79, %p80
      %p82 = scmp.ne.s32.totalorder %s74, %s76
      %p83 = scmp.eq.s32.totalorder %s24, 1
      %p84 = por %p82, %p83
      %p85 = scmp.ne.s32.totalorder %s76, %s77
      %p86 = scmp.eq.s32.totalorder %s24, 0
      %p87 = por %p85, %p86
      %p88 = scmp.ne.s32.totalorder %s76, %s77
      %p89 = scmp.eq.s32.totalorder %s25, 1
      %p90 = por %p88, %p89
      %p92 = scmp.ne.s32.totalorder %s77, %s91
      %p93 = scmp.eq.s32.totalorder %s25, 0
      %p94 = por %p92, %p93
      %s96 = sadd.s32 %s95, 1
      %p99 = scmp.eq.s32.totalorder %s19, 1
      %p100 = scmp.ne.s32.totalorder %s95, %s97
      %p101 = scmp.eq.s32.totalorder %s19, 0
      %p102 = por %p100, %p101
      %p103 = scmp.ne.s32.totalorder %s95, %s97
      %p104 = scmp.eq.s32.totalorder %s24, 1
      %p105 = por %p103, %p104
      %p106 = scmp.ne.s32.totalorder %s97, %s98
      %p107 = scmp.eq.s32.totalorder %s24, 0
      %p108 = por %p106, %p107
      %p109 = scmp.ne.s32.totalorder %s97, %s98
      %p110 = scmp.eq.s32.totalorder %s25, 1
      %p111 = por %p109, %p110
      %p113 = scmp.ne.s32.totalorder %s98, %s112
      %p114 = scmp.eq.s32.totalorder %s25, 0
      %p115 = por %p113, %p114
      %s117 = sadd.s32 %s116, 1
      %p120 = scmp.eq.s32.totalorder %s19, 1
      %p121 = scmp.ne.s32.totalorder %s116, %s118
      %p122 = scmp.eq.s32.totalorder %s19, 0
      %p123 = por %p121, %p122
      %p124 = scmp.ne.s32.totalorder %s116, %s118
      %p125 = scmp.eq.s32.totalorder %s24, 1
      %p126 = por %p124, %p125
      %p127 = scmp.ne.s32.totalorder %s118, %s119
      %p128 = scmp.eq.s32.totalorder %s24, 0
      %p129 = por %p127, %p128
      %p130 = scmp.ne.s32.totalorder %s118, %s119
      %p131 = scmp.eq.s32.totalorder %s25, 1
      %p132 = por %p130, %p131
      %p134 = scmp.ne.s32.totalorder %s119, %s133
      %p135 = scmp.eq.s32.totalorder %s25, 0
      %p136 = por %p134, %p135
      %s137 = ssub.s32 %s19, %s26
      %p138 = scmp.eq.s32.totalorder %s137, 0
      %s140 = sadd.s32 %s139, 1
      %s141 = scalar_select %p138, %s139, %s140
      %p144 = pneg %p138
      %p145 = scmp.eq.s32.totalorder %s19, 1
      %p146 = por %p144, %p145
      %p147 = scmp.ne.s32.totalorder %s139, %s142
      %p148 = scmp.eq.s32.totalorder %s19, 0
      %p149 = por %p147, %p148
      %p150 = scmp.ne.s32.totalorder %s139, %s142
      %p151 = scmp.eq.s32.totalorder %s24, 1
      %p152 = por %p150, %p151
      %p153 = scmp.ne.s32.totalorder %s142, %s143
      %p154 = scmp.eq.s32.totalorder %s24, 0
      %p155 = por %p153, %p154
      %p156 = scmp.ne.s32.totalorder %s142, %s143
      %p157 = scmp.eq.s32.totalorder %s25, 1
      %p158 = por %p156, %p157
      %p160 = scmp.ne.s32.totalorder %s143, %s159
      %p161 = scmp.eq.s32.totalorder %s25, 0
      %p162 = por %p160, %p161
      %p163 = scmp.le.s32.totalorder 1, %s19
      %p164 = scmp.lt.s32.totalorder %s19, 3
      %p165 = pnand %p163, %p164
      %p166 = pneg %p165
      // Predicated region
      $region9: #{tpu_custom_call.1} parent=5 // pred_check
        _
      $region10: #{tpu_custom_call.1} parent=5 // pred_check_branch
        %168 = sbr.rel (%p165) target = $region12
      $region11: #{tpu_custom_call.1} parent=5 // pred_region
        %s169 = ssub.s32 %s19, 1
        // Predicated region
        $region13: #{tpu_custom_call.1} parent=11 // pred_check
          %p170 = pneg %p66
        $region14: #{tpu_custom_call.1} parent=11 // pred_check_branch
          %172 = sbr.rel (%p170) target = $region16
        $region15: #{tpu_custom_call.1} parent=11 // pred_region
          _
        $region16: #{tpu_custom_call.1} parent=11 // pred_fallthru
          _
        // Predicated region
        $region17: #{tpu_custom_call.1} parent=11 // pred_check
          %p173 = pneg %p87
        $region18: #{tpu_custom_call.1} parent=11 // pred_check_branch
          %175 = sbr.rel (%p173) target = $region20
        $region19: #{tpu_custom_call.1} parent=11 // pred_region
          _
        $region20: #{tpu_custom_call.1} parent=11 // pred_fallthru
          _
        // Predicated region
        $region21: #{tpu_custom_call.1} parent=11 // pred_check
          %p176 = pneg %p108
        $region22: #{tpu_custom_call.1} parent=11 // pred_check_branch
          %178 = sbr.rel (%p176) target = $region24
        $region23: #{tpu_custom_call.1} parent=11 // pred_region
          %s180 = ssub.s32 8192, 8192
          %181 = vsyncadd [#allocation7], %s180
          %s182 = sshll.u32 [#allocation6], 4
          %s183 = int_to_ptr.vmem [resolvable:$true] %s182
          %188 = dma.hbm_to_vmem [thread:$0]  %s3, 8192, %s183, [#allocation7], 128, 128, 8
        $region24: #{tpu_custom_call.1} parent=11 // pred_fallthru
          _
        // Predicated region
        $region25: #{tpu_custom_call.1} parent=11 // pred_check
          %p189 = pneg %p129
        $region26: #{tpu_custom_call.1} parent=11 // pred_check_branch
          %191 = sbr.rel (%p189) target = $region28
        $region27: #{tpu_custom_call.1} parent=11 // pred_region
          _
        $region28: #{tpu_custom_call.1} parent=11 // pred_fallthru
          _
      $region12: #{tpu_custom_call.1} parent=5 // pred_fallthru
        _
      %p192 = scmp.lt.s32.totalorder %s19, 2
      // Predicated region
      $region29: #{tpu_custom_call.1} parent=5 // pred_check
        %p193 = pneg %p192
      $region30: #{tpu_custom_call.1} parent=5 // pred_check_branch
        %195 = sbr.rel (%p193) target = $region32
      $region31: #{tpu_custom_call.1} parent=5 // pred_region
        // Predicated region
        $region33: #{tpu_custom_call.1} parent=31 // pred_check
          %p196 = pneg %p39
        $region34: #{tpu_custom_call.1} parent=31 // pred_check_branch
          %198 = sbr.rel (%p196) target = $region36
        $region35: #{tpu_custom_call.1} parent=31 // pred_region
          %s199 = sand.u32 %s29, 1
          %s200 = scalar_lea.sflag [#allocation4], %s199
          %s201 = sand.u32 %s29, 1
          %s202 = smul.addr %s201, 64
          %s203 = scalar_lea.vmem [#allocation3], %s202
          %s205 = ssub.s32 1024, 1024
          %206 = vsyncadd %s200, %s205
          %s207 = smul.addr %s19, 8
          %s208 = smul.addr %s207, 128
          %s209 = scalar_lea.hbm %s0, %s208
          %s210 = sshll.u32 %s203, 4
          %s211 = int_to_ptr.vmem [resolvable:$true] %s210
          %216 = dma.hbm_to_vmem [thread:$0]  %s209, 1024, %s211, %s200, 256, 256, 16
        $region36: #{tpu_custom_call.1} parent=31 // pred_fallthru
          _
      $region32: #{tpu_custom_call.1} parent=5 // pred_fallthru
        _
      %p217 = scmp.le.s32.totalorder 1, %s19
      %p218 = scmp.lt.s32.totalorder %s19, 3
      %p219 = pnand %p217, %p218
      %p220 = pneg %p219
      // Predicated region
      $region37: #{tpu_custom_call.1} parent=5 // pred_check
        _
      $region38: #{tpu_custom_call.1} parent=5 // pred_check_branch
        %222 = sbr.rel (%p219) target = $region40
      $region39: #{tpu_custom_call.1} parent=5 // pred_region
        %s223 = ssub.s32 %s19, 1
        %s224 = sand.u32 %s32, 1
        %s225 = scalar_lea.sflag [#allocation4], %s224
        %s226 = sand.u32 %s32, 1
        %s227 = smul.addr %s226, 64
        %s228 = scalar_lea.vmem [#allocation3], %s227
        // Predicated region
        $region41: #{tpu_custom_call.1} parent=39 // pred_check
          %p229 = pneg %p45
        $region42: #{tpu_custom_call.1} parent=39 // pred_check_branch
          %231 = sbr.rel (%p229) target = $region44
        $region43: #{tpu_custom_call.1} parent=39 // pred_region
          %232 = dma.done %s225, 1024
        $region44: #{tpu_custom_call.1} parent=39 // pred_fallthru
          _
        // Predicated region
        $region45: #{tpu_custom_call.1} parent=39 // pred_check
          %p233 = pneg %p108
        $region46: #{tpu_custom_call.1} parent=39 // pred_check_branch
          %235 = sbr.rel (%p233) target = $region48
        $region47: #{tpu_custom_call.1} parent=39 // pred_region
          %236 = dma.done [#allocation7], 8192
        $region48: #{tpu_custom_call.1} parent=39 // pred_fallthru
          _
        %s237 = sand.u32 %s32, 1
        %s238 = scalar_lea.sflag [#allocation4], %s237
        %s239 = sand.u32 %s32, 1
        %s240 = smul.addr %s239, 64
        %s241 = scalar_lea.vmem [#allocation3], %s240
        %p242 = pneg %p45
        %p243 = pneg %p42
        %p244 = pneg %p66
        %p245 = pneg %p63
        %p246 = pneg %p87
        %p247 = pneg %p84
        %p248 = pneg %p108
        %p249 = pneg %p105
        %p250 = pneg %p129
        %p251 = pneg %p126
        %p252 = pneg %p155
        %p253 = pneg %p152
        %s254 = sand.u32 %s142, 1
        %s255 = scalar_lea.sflag [#allocation5], %s254
        %s256 = sand.u32 %s142, 1
        %s257 = smul.addr %s256, 64
        %s258 = scalar_lea.vmem [#allocation8], %s257
        %v259 = vld [vmem:[%s228] sm:$0xff]
        %v260 = vld [vmem:[%s228 + $0x8] sm:$0xff]
        %v261 = vld [vmem:[%s228 + $0x10] sm:$0xff]
        %v262 = vld [vmem:[%s228 + $0x18] sm:$0xff]
        %v263 = vld [vmem:[%s228 + $0x20] sm:$0xff]
        %v264 = vld [vmem:[%s228 + $0x28] sm:$0xff]
        %v265 = vld [vmem:[%s228 + $0x30] sm:$0xff]
        %v266 = vld [vmem:[%s228 + $0x38] sm:$0xff]
        %v267 = vmax.f32 %v259, %v260
        %268 = vmax.xlane.f32.xlu0 %v267
        %v269 = vpop.xlane.xlu0 %268
        %v270 = vmax.f32 %v261, %v262
        %271 = vmax.xlane.f32.xlu0 %v270
        %v272 = vpop.xlane.xlu0 %271
        %v273 = vmax.f32 %v263, %v264
        %274 = vmax.xlane.f32.xlu0 %v273
        %v275 = vpop.xlane.xlu0 %274
        %v276 = vmax.f32 %v265, %v266
        %277 = vmax.xlane.f32.xlu0 %v276
        %v278 = vpop.xlane.xlu0 %277
        %v279 = vadd.f32 %v259, %v260
        %280 = vadd.xlane.f32.xlu0 %v279
        %v281 = vpop.xlane.xlu0 %280
        %v282 = vadd.f32 %v261, %v262
        %283 = vadd.xlane.f32.xlu0 %v282
        %v284 = vpop.xlane.xlu0 %283
        %v285 = vadd.f32 %v263, %v264
        %286 = vadd.xlane.f32.xlu0 %v285
        %v287 = vpop.xlane.xlu0 %286
        %v288 = vadd.f32 %v265, %v266
        %289 = vadd.xlane.f32.xlu0 %v288
        %v290 = vpop.xlane.xlu0 %289
        %v291 = vrcp.pop 256.0
        %v292 = vmul.f32 %v281, %v291
        %v293 = vmul.f32 %v284, %v291
        %v294 = vmul.f32 %v287, %v291
        %v295 = vmul.f32 %v290, %v291
        %v300 = vlaneseq
        %v301 = vand.u32 %v300, 127
        %v302 = vlaneseq
        %v303 = vshrl.u32 %v302, 7
        %v304 = vsub.s32 %v301, %v303
        %v305 = vrot.slane %v269, %v304
        %v306 = vadd.s32 %v301, 4294967288
        %v307 = vlaneseq
        %v308 = vshrl.u32 %v307, 7
        %v309 = vsub.s32 %v306, %v308
        %v310 = vrot.slane %v272, %v309
        %vm311 = vcmask 130112
        %v312 = vsel %vm311, %v310, %v305
        %v313 = vadd.s32 %v301, 4294967280
        %v314 = vlaneseq
        %v315 = vshrl.u32 %v314, 7
        %v316 = vsub.s32 %v313, %v315
        %v317 = vrot.slane %v275, %v316
        %vm318 = vcmask 195712
        %v319 = vsel %vm318, %v317, %v312
        %v320 = vadd.s32 %v301, 4294967272
        %v321 = vlaneseq
        %v322 = vshrl.u32 %v321, 7
        %v323 = vsub.s32 %v320, %v322
        %v324 = vrot.slane %v278, %v323
        %vm325 = vcmask 261312
        %v326 = vsel %vm325, %v324, %v319
        %v332 = vlaneseq
        %v333 = vshrl.u32 %v332, 7
        %v334 = vsub.s32 %v301, %v333
        %v335 = vrot.slane %v292, %v334
        %v336 = vlaneseq
        %v337 = vshrl.u32 %v336, 7
        %v338 = vsub.s32 %v306, %v337
        %v339 = vrot.slane %v293, %v338
        %v340 = vsel %vm311, %v339, %v335
        %v341 = vlaneseq
        %v342 = vshrl.u32 %v341, 7
        %v343 = vsub.s32 %v313, %v342
        %v344 = vrot.slane %v294, %v343
        %v345 = vsel %vm318, %v344, %v340
        %v346 = vlaneseq
        %v347 = vshrl.u32 %v346, 7
        %v348 = vsub.s32 %v320, %v347
        %v349 = vrot.slane %v295, %v348
        %v350 = vsel %vm325, %v349, %v345
        %vm352 = vcmask 1040384
        %v353 = vsel %vm352, %v326, %v350
        %v354 = vld [vmem:[%s1] sm:$0xff]
        %v355 = vld [vmem:[%s1 + $0x8] sm:$0xff]
        %v356 = vld [vmem:[%s1 + $0x10] sm:$0xff]
        %v357 = vld [vmem:[%s1 + $0x18] sm:$0xff]
        %vm358 = vcmask 261120
        %v360 = vsel %vm358, %v353, 0
        %362 = vmatprep.subr.mxu0 0.0
        %363 = vmatpush1.msra.mxu0 0.0
        %364 = vmatprep.subr.mxu0 0.0
        %365 = vmatpush1.msra.mxu0 0.0
        %366 = vmatprep.subr.mxu0 0.0
        %367 = vmatpush1.msra.mxu0 0.0
        %368 = vmatprep.subr.mxu0 0.0
        %369 = vmatpush1.msra.mxu0 0.0
        %370 = vmatprep.subr.mxu0 0.0
        %371 = vmatpush1.msra.mxu0 0.0
        %372 = vmatprep.subr.mxu0 0.0
        %373 = vmatpush1.msra.mxu0 0.0
        %374 = vmatprep.subr.mxu0 0.0
        %375 = vmatpush1.msra.mxu0 0.0
        %376 = vmatprep.subr.mxu0 0.0
        %377 = vmatpush1.msra.mxu0 0.0
        %378 = vmatprep.subr.mxu0 0.0
        %379 = vmatpush1.msra.mxu0 0.0
        %380 = vmatprep.subr.mxu0 0.0
        %381 = vmatpush1.msra.mxu0 0.0
        %382 = vmatprep.subr.mxu0 0.0
        %383 = vmatpush1.msra.mxu0 0.0
        %384 = vmatprep.subr.mxu0 0.0
        %385 = vmatpush1.msra.mxu0 0.0
        %386 = vmatprep.subr.mxu0 0.0
        %387 = vmatpush1.msra.mxu0 %v357
        %388 = vmatprep.subr.mxu0 0.0
        %389 = vmatpush1.msra.mxu0 %v356
        %390 = vmatprep.subr.mxu0 0.0
        %391 = vmatpush1.msra.mxu0 %v355
        %392 = vmatprep.subr.mxu0 0.0
        %393 = vmatpush1.msra.mxu0 %v354
        %394 = vmatprep.subr.mxu0 0.0
        %395 = vmatpush2.msra.mxu0 0.0
        %396 = vmatprep.subr.mxu0 0.0
        %397 = vmatpush2.msra.mxu0 0.0
        %398 = vmatprep.subr.mxu0 0.0
        %399 = vmatpush2.msra.mxu0 0.0
        %400 = vmatprep.subr.mxu0 0.0
        %401 = vmatpush2.msra.mxu0 0.0
        %402 = vmatprep.subr.mxu0 0.0
        %403 = vmatpush2.msra.mxu0 0.0
        %404 = vmatprep.subr.mxu0 0.0
        %405 = vmatpush2.msra.mxu0 0.0
        %406 = vmatprep.subr.mxu0 0.0
        %407 = vmatpush2.msra.mxu0 0.0
        %408 = vmatprep.subr.mxu0 0.0
        %409 = vmatpush2.msra.mxu0 0.0
        %410 = vmatprep.subr.mxu0 0.0
        %411 = vmatpush2.msra.mxu0 0.0
        %412 = vmatprep.subr.mxu0 0.0
        %413 = vmatpush2.msra.mxu0 0.0
        %414 = vmatprep.subr.mxu0 0.0
        %415 = vmatpush2.msra.mxu0 0.0
        %416 = vmatprep.subr.mxu0 0.0
        %417 = vmatpush2.msra.mxu0 0.0
        %418 = vmatprep.subr.mxu0 0.0
        %419 = vmatpush2.msra.mxu0 0.0
        %420 = vmatprep.subr.mxu0 0.0
        %421 = vmatpush2.msra.mxu0 0.0
        %422 = vmatprep.subr.mxu0 0.0
        %423 = vmatpush2.msra.mxu0 0.0
        %424 = vmatprep.subr.mxu0 0.0
        %425 = vmatpush2.msra.mxu0 0.0
        %426 = vmatprep.mubr.f32.mxu0 0.0
        %427 = vmatmul.mubr.f32.gmra.mxu0 %v360
        %v428 = vpop.f32.mrf.mxu0
        %v429 = vadd.f32 0.0, %v428
        %v430 = vpop.f32.mrf.mxu0
        %431 = vdwg.mxu0
        %v432 = vmax.f32 %v429, 0.0
        %v433 = vld [vmem:[%s2] sm:$0x3]
        %vm434 = vcmask 15360
        %v436 = vsel %vm434, %v432, 0
        %vm438 = vcmask 1041408
        %v440 = vsel %vm438, %v433, 0
        %442 = vmatprep.subr.mxu0 0.0
        %443 = vmatpush1.msra.mxu0 0.0
        %444 = vmatprep.subr.mxu0 0.0
        %445 = vmatpush1.msra.mxu0 0.0
        %446 = vmatprep.subr.mxu0 0.0
        %447 = vmatpush1.msra.mxu0 0.0
        %448 = vmatprep.subr.mxu0 0.0
        %449 = vmatpush1.msra.mxu0 0.0
        %450 = vmatprep.subr.mxu0 0.0
        %451 = vmatpush1.msra.mxu0 0.0
        %452 = vmatprep.subr.mxu0 0.0
        %453 = vmatpush1.msra.mxu0 0.0
        %454 = vmatprep.subr.mxu0 0.0
        %455 = vmatpush1.msra.mxu0 0.0
        %456 = vmatprep.subr.mxu0 0.0
        %457 = vmatpush1.msra.mxu0 0.0
        %458 = vmatprep.subr.mxu0 0.0
        %459 = vmatpush1.msra.mxu0 0.0
        %460 = vmatprep.subr.mxu0 0.0
        %461 = vmatpush1.msra.mxu0 0.0
        %462 = vmatprep.subr.mxu0 0.0
        %463 = vmatpush1.msra.mxu0 0.0
        %464 = vmatprep.subr.mxu0 0.0
        %465 = vmatpush1.msra.mxu0 0.0
        %466 = vmatprep.subr.mxu0 0.0
        %467 = vmatpush1.msra.mxu0 0.0
        %468 = vmatprep.subr.mxu0 0.0
        %469 = vmatpush1.msra.mxu0 0.0
        %470 = vmatprep.subr.mxu0 0.0
        %471 = vmatpush1.msra.mxu0 0.0
        %472 = vmatprep.subr.mxu0 0.0
        %473 = vmatpush1.msra.mxu0 %v440
        %474 = vmatprep.subr.mxu0 0.0
        %475 = vmatpush2.msra.mxu0 0.0
        %476 = vmatprep.subr.mxu0 0.0
        %477 = vmatpush2.msra.mxu0 0.0
        %478 = vmatprep.subr.mxu0 0.0
        %479 = vmatpush2.msra.mxu0 0.0
        %480 = vmatprep.subr.mxu0 0.0
        %481 = vmatpush2.msra.mxu0 0.0
        %482 = vmatprep.subr.mxu0 0.0
        %483 = vmatpush2.msra.mxu0 0.0
        %484 = vmatprep.subr.mxu0 0.0
        %485 = vmatpush2.msra.mxu0 0.0
        %486 = vmatprep.subr.mxu0 0.0
        %487 = vmatpush2.msra.mxu0 0.0
        %488 = vmatprep.subr.mxu0 0.0
        %489 = vmatpush2.msra.mxu0 0.0
        %490 = vmatprep.subr.mxu0 0.0
        %491 = vmatpush2.msra.mxu0 0.0
        %492 = vmatprep.subr.mxu0 0.0
        %493 = vmatpush2.msra.mxu0 0.0
        %494 = vmatprep.subr.mxu0 0.0
        %495 = vmatpush2.msra.mxu0 0.0
        %496 = vmatprep.subr.mxu0 0.0
        %497 = vmatpush2.msra.mxu0 0.0
        %498 = vmatprep.subr.mxu0 0.0
        %499 = vmatpush2.msra.mxu0 0.0
        %500 = vmatprep.subr.mxu0 0.0
        %501 = vmatpush2.msra.mxu0 0.0
        %502 = vmatprep.subr.mxu0 0.0
        %503 = vmatpush2.msra.mxu0 0.0
        %504 = vmatprep.subr.mxu0 0.0
        %505 = vmatpush2.msra.mxu0 0.0
        %506 = vmatprep.mubr.f32.mxu0 0.0
        %507 = vmatmul.mubr.f32.gmra.mxu0 %v436
        %v508 = vpop.f32.mrf.mxu0
        %v509 = vadd.f32 0.0, %v508
        %v510 = vpop.f32.mrf.mxu0
        %511 = vdwg.mxu0
        %v513 = vrot.slane %v509, 1
        %v515 = vadd.f32 %v509, %v513
        %v516 = vxor.u32 %v515, 2147483648
        %v517 = vmul.f32 %v516, 1.442695
        %v518 = vpow.pop %v517
        %v519 = vadd.f32 %v518, 1.0
        %v520 = vrcp.pop %v519
        %v521 = vmul.f32 1.0, %v520
        %v522 = vlaneseq
        %v523 = vshrl.u32 %v522, 7
        %v524 = vsub.s32 0, %v523
        %v525 = vrot.slane %v521, %v524
        %527 = vbcast.lane.b32.xlu0 %v525, 256
        %v528 = vpop.permute.xlu0 %527
        %s530 = sor.u32 256, 8
        %531 = vbcast.lane.b32.xlu0 %v525, %s530
        %v532 = vpop.permute.xlu0 %531
        %s534 = sor.u32 256, 16
        %535 = vbcast.lane.b32.xlu0 %v525, %s534
        %v536 = vpop.permute.xlu0 %535
        %s538 = sor.u32 256, 24
        %539 = vbcast.lane.b32.xlu0 %v525, %s538
        %v540 = vpop.permute.xlu0 %539
        %v541 = vmul.f32 %v259, %v528
        %v542 = vmul.f32 %v260, %v528
        %v543 = vmul.f32 %v261, %v532
        %v544 = vmul.f32 %v262, %v532
        %v545 = vmul.f32 %v263, %v536
        %v546 = vmul.f32 %v264, %v536
        %v547 = vmul.f32 %v265, %v540
        %v548 = vmul.f32 %v266, %v540
        %v549 = vmax.f32 %v541, %v545
        %v550 = vmax.f32 %v543, %v547
        %v551 = vmax.f32 %v549, %v550
        %v552 = vrot.slane %v551, 4
        %v553 = vmax.f32 %v551, %v552
        %v554 = vrot.slane %v553, 2
        %v555 = vmax.f32 %v553, %v554
        %v556 = vrot.slane %v555, 1
        %v557 = vmax.f32 %v555, %v556
        %v558 = vmax.f32 %v542, %v546
        %v559 = vmax.f32 %v544, %v548
        %v560 = vmax.f32 %v558, %v559
        %v561 = vrot.slane %v560, 4
        %v562 = vmax.f32 %v560, %v561
        %v563 = vrot.slane %v562, 2
        %v564 = vmax.f32 %v562, %v563
        %v565 = vrot.slane %v564, 1
        %v566 = vmax.f32 %v564, %v565
        %v567 = vadd.f32 %v541, %v543
        %v568 = vadd.f32 %v567, %v545
        %v569 = vadd.f32 %v568, %v547
        %v570 = vrot.slane %v569, 4
        %v571 = vadd.f32 %v569, %v570
        %v572 = vrot.slane %v571, 2
        %v573 = vadd.f32 %v571, %v572
        %v574 = vrot.slane %v573, 1
        %v575 = vadd.f32 %v573, %v574
        %v576 = vadd.f32 %v542, %v544
        %v577 = vadd.f32 %v576, %v546
        %v578 = vadd.f32 %v577, %v548
        %v579 = vrot.slane %v578, 4
        %v580 = vadd.f32 %v578, %v579
        %v581 = vrot.slane %v580, 2
        %v582 = vadd.f32 %v580, %v581
        %v583 = vrot.slane %v582, 1
        %v584 = vadd.f32 %v582, %v583
        %v585 = vrcp.pop 32.0
        %v586 = vmul.f32 %v575, %v585
        %v587 = vmul.f32 %v584, %v585
        %v588 = vpack.c.bf16 %v557, %v557
        %v589 = vpack.c.bf16 %v566, %v566
        %v590 = vpack.c.bf16 %v586, %v586
        %v591 = vpack.c.bf16 %v587, %v587
        %v592 = vld [vmem:[#allocation6] sm:$0xff]
        %v593 = vld [vmem:[#allocation6 + $0x8] sm:$0xff]
        %v594 = vld [vmem:[#allocation6 + $0x10] sm:$0xff]
        %v595 = vld [vmem:[#allocation6 + $0x18] sm:$0xff]
        %v596 = vld [vmem:[#allocation6 + $0x20] sm:$0xff]
        %v597 = vld [vmem:[#allocation6 + $0x28] sm:$0xff]
        %v598 = vld [vmem:[#allocation6 + $0x30] sm:$0xff]
        %v599 = vld [vmem:[#allocation6 + $0x38] sm:$0xff]
        %v600 = vld [vmem:[#allocation6 + $0x40] sm:$0xff]
        %v601 = vld [vmem:[#allocation6 + $0x48] sm:$0xff]
        %v602 = vld [vmem:[#allocation6 + $0x50] sm:$0xff]
        %v603 = vld [vmem:[#allocation6 + $0x58] sm:$0xff]
        %v604 = vld [vmem:[#allocation6 + $0x60] sm:$0xff]
        %v605 = vld [vmem:[#allocation6 + $0x68] sm:$0xff]
        %v606 = vld [vmem:[#allocation6 + $0x70] sm:$0xff]
        %v607 = vld [vmem:[#allocation6 + $0x78] sm:$0xff]
        %v608 = vld [vmem:[#allocation6 + $0x80] sm:$0xff]
        %v609 = vld [vmem:[#allocation6 + $0x88] sm:$0xff]
        %v610 = vld [vmem:[#allocation6 + $0x90] sm:$0xff]
        %v611 = vld [vmem:[#allocation6 + $0x98] sm:$0xff]
        %v612 = vld [vmem:[#allocation6 + $0xa0] sm:$0xff]
        %v613 = vld [vmem:[#allocation6 + $0xa8] sm:$0xff]
        %v614 = vld [vmem:[#allocation6 + $0xb0] sm:$0xff]
        %v615 = vld [vmem:[#allocation6 + $0xb8] sm:$0xff]
        %v616 = vld [vmem:[#allocation6 + $0xc0] sm:$0xff]
        %v617 = vld [vmem:[#allocation6 + $0xc8] sm:$0xff]
        %v618 = vld [vmem:[#allocation6 + $0xd0] sm:$0xff]
        %v619 = vld [vmem:[#allocation6 + $0xd8] sm:$0xff]
        %v620 = vld [vmem:[#allocation6 + $0xe0] sm:$0xff]
        %v621 = vld [vmem:[#allocation6 + $0xe8] sm:$0xff]
        %v622 = vld [vmem:[#allocation6 + $0xf0] sm:$0xff]
        %v623 = vld [vmem:[#allocation6 + $0xf8] sm:$0xff]
        %v624 = vld [vmem:[#allocation6 + $0x100] sm:$0xff]
        %v625 = vld [vmem:[#allocation6 + $0x108] sm:$0xff]
        %v626 = vld [vmem:[#allocation6 + $0x110] sm:$0xff]
        %v627 = vld [vmem:[#allocation6 + $0x118] sm:$0xff]
        %v628 = vld [vmem:[#allocation6 + $0x120] sm:$0xff]
        %v629 = vld [vmem:[#allocation6 + $0x128] sm:$0xff]
        %v630 = vld [vmem:[#allocation6 + $0x130] sm:$0xff]
        %v631 = vld [vmem:[#allocation6 + $0x138] sm:$0xff]
        %v632 = vld [vmem:[#allocation6 + $0x140] sm:$0xff]
        %v633 = vld [vmem:[#allocation6 + $0x148] sm:$0xff]
        %v634 = vld [vmem:[#allocation6 + $0x150] sm:$0xff]
        %v635 = vld [vmem:[#allocation6 + $0x158] sm:$0xff]
        %v636 = vld [vmem:[#allocation6 + $0x160] sm:$0xff]
        %v637 = vld [vmem:[#allocation6 + $0x168] sm:$0xff]
        %v638 = vld [vmem:[#allocation6 + $0x170] sm:$0xff]
        %v639 = vld [vmem:[#allocation6 + $0x178] sm:$0xff]
        %v640 = vld [vmem:[#allocation6 + $0x180] sm:$0xff]
        %v641 = vld [vmem:[#allocation6 + $0x188] sm:$0xff]
        %v642 = vld [vmem:[#allocation6 + $0x190] sm:$0xff]
        %v643 = vld [vmem:[#allocation6 + $0x198] sm:$0xff]
        %v644 = vld [vmem:[#allocation6 + $0x1a0] sm:$0xff]
        %v645 = vld [vmem:[#allocation6 + $0x1a8] sm:$0xff]
        %v646 = vld [vmem:[#allocation6 + $0x1b0] sm:$0xff]
        %v647 = vld [vmem:[#allocation6 + $0x1b8] sm:$0xff]
        %v648 = vld [vmem:[#allocation6 + $0x1c0] sm:$0xff]
        %v649 = vld [vmem:[#allocation6 + $0x1c8] sm:$0xff]
        %v650 = vld [vmem:[#allocation6 + $0x1d0] sm:$0xff]
        %v651 = vld [vmem:[#allocation6 + $0x1d8] sm:$0xff]
        %v652 = vld [vmem:[#allocation6 + $0x1e0] sm:$0xff]
        %v653 = vld [vmem:[#allocation6 + $0x1e8] sm:$0xff]
        %v654 = vld [vmem:[#allocation6 + $0x1f0] sm:$0xff]
        %v655 = vld [vmem:[#allocation6 + $0x1f8] sm:$0xff]
        %s656 = sld [smem:[#allocation2]]
        %v657 = vstv %s656
        %v722 = vunpack.c.l.b16 %v592
        %v723 = vunpack.c.h.b16 %v592
        %v724 = vunpack.c.l.b16 %v593
        %v725 = vunpack.c.h.b16 %v593
        %v726 = vunpack.c.l.b16 %v594
        %v727 = vunpack.c.h.b16 %v594
        %v728 = vunpack.c.l.b16 %v595
        %v729 = vunpack.c.h.b16 %v595
        %v730 = vunpack.c.l.b16 %v596
        %v731 = vunpack.c.h.b16 %v596
        %v732 = vunpack.c.l.b16 %v597
        %v733 = vunpack.c.h.b16 %v597
        %v734 = vunpack.c.l.b16 %v598
        %v735 = vunpack.c.h.b16 %v598
        %v736 = vunpack.c.l.b16 %v599
        %v737 = vunpack.c.h.b16 %v599
        %v738 = vunpack.c.l.b16 %v600
        %v739 = vunpack.c.h.b16 %v600
        %v740 = vunpack.c.l.b16 %v601
        %v741 = vunpack.c.h.b16 %v601
        %v742 = vunpack.c.l.b16 %v602
        %v743 = vunpack.c.h.b16 %v602
        %v744 = vunpack.c.l.b16 %v603
        %v745 = vunpack.c.h.b16 %v603
        %v746 = vunpack.c.l.b16 %v604
        %v747 = vunpack.c.h.b16 %v604
        %v748 = vunpack.c.l.b16 %v605
        %v749 = vunpack.c.h.b16 %v605
        %v750 = vunpack.c.l.b16 %v606
        %v751 = vunpack.c.h.b16 %v606
        %v752 = vunpack.c.l.b16 %v607
        %v753 = vunpack.c.h.b16 %v607
        %v754 = vunpack.c.l.b16 %v608
        %v755 = vunpack.c.h.b16 %v608
        %v756 = vunpack.c.l.b16 %v609
        %v757 = vunpack.c.h.b16 %v609
        %v758 = vunpack.c.l.b16 %v610
        %v759 = vunpack.c.h.b16 %v610
        %v760 = vunpack.c.l.b16 %v611
        %v761 = vunpack.c.h.b16 %v611
        %v762 = vunpack.c.l.b16 %v612
        %v763 = vunpack.c.h.b16 %v612
        %v764 = vunpack.c.l.b16 %v613
        %v765 = vunpack.c.h.b16 %v613
        %v766 = vunpack.c.l.b16 %v614
        %v767 = vunpack.c.h.b16 %v614
        %v768 = vunpack.c.l.b16 %v615
        %v769 = vunpack.c.h.b16 %v615
        %v770 = vunpack.c.l.b16 %v616
        %v771 = vunpack.c.h.b16 %v616
        %v772 = vunpack.c.l.b16 %v617
        %v773 = vunpack.c.h.b16 %v617
        %v774 = vunpack.c.l.b16 %v618
        %v775 = vunpack.c.h.b16 %v618
        %v776 = vunpack.c.l.b16 %v619
        %v777 = vunpack.c.h.b16 %v619
        %v778 = vunpack.c.l.b16 %v620
        %v779 = vunpack.c.h.b16 %v620
        %v780 = vunpack.c.l.b16 %v621
        %v781 = vunpack.c.h.b16 %v621
        %v782 = vunpack.c.l.b16 %v622
        %v783 = vunpack.c.h.b16 %v622
        %v784 = vunpack.c.l.b16 %v623
        %v785 = vunpack.c.h.b16 %v623
        %v786 = vunpack.c.l.b16 %v624
        %v787 = vunpack.c.h.b16 %v624
        %v788 = vunpack.c.l.b16 %v625
        %v789 = vunpack.c.h.b16 %v625
        %v790 = vunpack.c.l.b16 %v626
        %v791 = vunpack.c.h.b16 %v626
        %v792 = vunpack.c.l.b16 %v627
        %v793 = vunpack.c.h.b16 %v627
        %v794 = vunpack.c.l.b16 %v628
        %v795 = vunpack.c.h.b16 %v628
        %v796 = vunpack.c.l.b16 %v629
        %v797 = vunpack.c.h.b16 %v629
        %v798 = vunpack.c.l.b16 %v630
        %v799 = vunpack.c.h.b16 %v630
        %v800 = vunpack.c.l.b16 %v631
        %v801 = vunpack.c.h.b16 %v631
        %v802 = vunpack.c.l.b16 %v632
        %v803 = vunpack.c.h.b16 %v632
        %v804 = vunpack.c.l.b16 %v633
        %v805 = vunpack.c.h.b16 %v633
        %v806 = vunpack.c.l.b16 %v634
        %v807 = vunpack.c.h.b16 %v634
        %v808 = vunpack.c.l.b16 %v635
        %v809 = vunpack.c.h.b16 %v635
        %v810 = vunpack.c.l.b16 %v636
        %v811 = vunpack.c.h.b16 %v636
        %v812 = vunpack.c.l.b16 %v637
        %v813 = vunpack.c.h.b16 %v637
        %v814 = vunpack.c.l.b16 %v638
        %v815 = vunpack.c.h.b16 %v638
        %v816 = vunpack.c.l.b16 %v639
        %v817 = vunpack.c.h.b16 %v639
        %v818 = vunpack.c.l.b16 %v640
        %v819 = vunpack.c.h.b16 %v640
        %v820 = vunpack.c.l.b16 %v641
        %v821 = vunpack.c.h.b16 %v641
        %v822 = vunpack.c.l.b16 %v642
        %v823 = vunpack.c.h.b16 %v642
        %v824 = vunpack.c.l.b16 %v643
        %v825 = vunpack.c.h.b16 %v643
        %v826 = vunpack.c.l.b16 %v644
        %v827 = vunpack.c.h.b16 %v644
        %v828 = vunpack.c.l.b16 %v645
        %v829 = vunpack.c.h.b16 %v645
        %v830 = vunpack.c.l.b16 %v646
        %v831 = vunpack.c.h.b16 %v646
        %v832 = vunpack.c.l.b16 %v647
        %v833 = vunpack.c.h.b16 %v647
        %v834 = vunpack.c.l.b16 %v648
        %v835 = vunpack.c.h.b16 %v648
        %v836 = vunpack.c.l.b16 %v649
        %v837 = vunpack.c.h.b16 %v649
        %v838 = vunpack.c.l.b16 %v650
        %v839 = vunpack.c.h.b16 %v650
        %v840 = vunpack.c.l.b16 %v651
        %v841 = vunpack.c.h.b16 %v651
        %v842 = vunpack.c.l.b16 %v652
        %v843 = vunpack.c.h.b16 %v652
        %v844 = vunpack.c.l.b16 %v653
        %v845 = vunpack.c.h.b16 %v653
        %v846 = vunpack.c.l.b16 %v654
        %v847 = vunpack.c.h.b16 %v654
        %v848 = vunpack.c.l.b16 %v655
        %v849 = vunpack.c.h.b16 %v655
        %v850 = vpack.c.b16 %v724, %v722
        %v851 = vpack.c.b16 %v725, %v723
        %v852 = vpack.c.b16 %v728, %v726
        %v853 = vpack.c.b16 %v729, %v727
        %v854 = vpack.c.b16 %v732, %v730
        %v855 = vpack.c.b16 %v733, %v731
        %v856 = vpack.c.b16 %v736, %v734
        %v857 = vpack.c.b16 %v737, %v735
        %v858 = vpack.c.b16 %v740, %v738
        %v859 = vpack.c.b16 %v741, %v739
        %v860 = vpack.c.b16 %v744, %v742
        %v861 = vpack.c.b16 %v745, %v743
        %v862 = vpack.c.b16 %v748, %v746
        %v863 = vpack.c.b16 %v749, %v747
        %v864 = vpack.c.b16 %v752, %v750
        %v865 = vpack.c.b16 %v753, %v751
        %v866 = vpack.c.b16 %v756, %v754
        %v867 = vpack.c.b16 %v757, %v755
        %v868 = vpack.c.b16 %v760, %v758
        %v869 = vpack.c.b16 %v761, %v759
        %v870 = vpack.c.b16 %v764, %v762
        %v871 = vpack.c.b16 %v765, %v763
        %v872 = vpack.c.b16 %v768, %v766
        %v873 = vpack.c.b16 %v769, %v767
        %v874 = vpack.c.b16 %v772, %v770
        %v875 = vpack.c.b16 %v773, %v771
        %v876 = vpack.c.b16 %v776, %v774
        %v877 = vpack.c.b16 %v777, %v775
        %v878 = vpack.c.b16 %v780, %v778
        %v879 = vpack.c.b16 %v781, %v779
        %v880 = vpack.c.b16 %v784, %v782
        %v881 = vpack.c.b16 %v785, %v783
        %v882 = vpack.c.b16 %v788, %v786
        %v883 = vpack.c.b16 %v789, %v787
        %v884 = vpack.c.b16 %v792, %v790
        %v885 = vpack.c.b16 %v793, %v791
        %v886 = vpack.c.b16 %v796, %v794
        %v887 = vpack.c.b16 %v797, %v795
        %v888 = vpack.c.b16 %v800, %v798
        %v889 = vpack.c.b16 %v801, %v799
        %v890 = vpack.c.b16 %v804, %v802
        %v891 = vpack.c.b16 %v805, %v803
        %v892 = vpack.c.b16 %v808, %v806
        %v893 = vpack.c.b16 %v809, %v807
        %v894 = vpack.c.b16 %v812, %v810
        %v895 = vpack.c.b16 %v813, %v811
        %v896 = vpack.c.b16 %v816, %v814
        %v897 = vpack.c.b16 %v817, %v815
        %v898 = vpack.c.b16 %v820, %v818
        %v899 = vpack.c.b16 %v821, %v819
        %v900 = vpack.c.b16 %v824, %v822
        %v901 = vpack.c.b16 %v825, %v823
        %v902 = vpack.c.b16 %v828, %v826
        %v903 = vpack.c.b16 %v829, %v827
        %v904 = vpack.c.b16 %v832, %v830
        %v905 = vpack.c.b16 %v833, %v831
        %v906 = vpack.c.b16 %v836, %v834
        %v907 = vpack.c.b16 %v837, %v835
        %v908 = vpack.c.b16 %v840, %v838
        %v909 = vpack.c.b16 %v841, %v839
        %v910 = vpack.c.b16 %v844, %v842
        %v911 = vpack.c.b16 %v845, %v843
        %v912 = vpack.c.b16 %v848, %v846
        %v913 = vpack.c.b16 %v849, %v847
        %978 = vmatprep.subr.bf16.mxu0 %v865
        %979 = vmatpush1.bf16.msra.mxu0 %v864
        %980 = vmatprep.subr.bf16.mxu0 %v863
        %981 = vmatpush1.bf16.msra.mxu0 %v862
        %982 = vmatprep.subr.bf16.mxu0 %v861
        %983 = vmatpush1.bf16.msra.mxu0 %v860
        %984 = vmatprep.subr.bf16.mxu0 %v859
        %985 = vmatpush1.bf16.msra.mxu0 %v858
        %986 = vmatprep.subr.bf16.mxu0 %v857
        %987 = vmatpush1.bf16.msra.mxu0 %v856
        %988 = vmatprep.subr.bf16.mxu0 %v855
        %989 = vmatpush1.bf16.msra.mxu0 %v854
        %990 = vmatprep.subr.bf16.mxu0 %v853
        %991 = vmatpush1.bf16.msra.mxu0 %v852
        %992 = vmatprep.subr.bf16.mxu0 %v851
        %993 = vmatpush1.bf16.msra.mxu0 %v850
        %994 = vmatprep.subr.bf16.mxu0 %v881
        %995 = vmatpush2.bf16.msra.mxu0 %v880
        %996 = vmatprep.subr.bf16.mxu0 %v879
        %997 = vmatpush2.bf16.msra.mxu0 %v878
        %998 = vmatprep.subr.bf16.mxu0 %v877
        %999 = vmatpush2.bf16.msra.mxu0 %v876
        %1000 = vmatprep.subr.bf16.mxu0 %v875
        %1001 = vmatpush2.bf16.msra.mxu0 %v874
        %1002 = vmatprep.subr.bf16.mxu0 %v873
        %1003 = vmatpush2.bf16.msra.mxu0 %v872
        %1004 = vmatprep.subr.bf16.mxu0 %v871
        %1005 = vmatpush2.bf16.msra.mxu0 %v870
        %1006 = vmatprep.subr.bf16.mxu0 %v869
        %1007 = vmatpush2.bf16.msra.mxu0 %v868
        %1008 = vmatprep.subr.bf16.mxu0 %v867
        %1009 = vmatpush2.bf16.msra.mxu0 %v866
        %1010 = vmatprep.mubr.bf16.mxu0 %v589
        %1011 = vmatmul.mubr.bf16.gmra.mxu0 %v588
        %v1012 = vpop.f32.mrf.mxu0
        %v1013 = vadd.f32 %v657, %v1012
        %v1014 = vpop.f32.mrf.mxu0
        %v1015 = vadd.f32 %v657, %v1014
        %v1016 = vpop.f32.mrf.mxu0
        %v1017 = vpop.f32.mrf.mxu0
        %1018 = vdwg.mxu0
        %1019 = vmatprep.subr.bf16.mxu0 %v897
        %1020 = vmatpush1.bf16.msra.mxu0 %v896
        %1021 = vmatprep.subr.bf16.mxu0 %v895
        %1022 = vmatpush1.bf16.msra.mxu0 %v894
        %1023 = vmatprep.subr.bf16.mxu0 %v893
        %1024 = vmatpush1.bf16.msra.mxu0 %v892
        %1025 = vmatprep.subr.bf16.mxu0 %v891
        %1026 = vmatpush1.bf16.msra.mxu0 %v890
        %1027 = vmatprep.subr.bf16.mxu0 %v889
        %1028 = vmatpush1.bf16.msra.mxu0 %v888
        %1029 = vmatprep.subr.bf16.mxu0 %v887
        %1030 = vmatpush1.bf16.msra.mxu0 %v886
        %1031 = vmatprep.subr.bf16.mxu0 %v885
        %1032 = vmatpush1.bf16.msra.mxu0 %v884
        %1033 = vmatprep.subr.bf16.mxu0 %v883
        %1034 = vmatpush1.bf16.msra.mxu0 %v882
        %1035 = vmatprep.subr.bf16.mxu0 %v913
        %1036 = vmatpush2.bf16.msra.mxu0 %v912
        %1037 = vmatprep.subr.bf16.mxu0 %v911
        %1038 = vmatpush2.bf16.msra.mxu0 %v910
        %1039 = vmatprep.subr.bf16.mxu0 %v909
        %1040 = vmatpush2.bf16.msra.mxu0 %v908
        %1041 = vmatprep.subr.bf16.mxu0 %v907
        %1042 = vmatpush2.bf16.msra.mxu0 %v906
        %1043 = vmatprep.subr.bf16.mxu0 %v905
        %1044 = vmatpush2.bf16.msra.mxu0 %v904
        %1045 = vmatprep.subr.bf16.mxu0 %v903
        %1046 = vmatpush2.bf16.msra.mxu0 %v902
        %1047 = vmatprep.subr.bf16.mxu0 %v901
        %1048 = vmatpush2.bf16.msra.mxu0 %v900
        %1049 = vmatprep.subr.bf16.mxu0 %v899
        %1050 = vmatpush2.bf16.msra.mxu0 %v898
        %1051 = vmatprep.mubr.bf16.mxu0 %v591
        %1052 = vmatmul.mubr.bf16.gmra.mxu0 %v590
        %v1053 = vpop.f32.mrf.mxu0
        %v1054 = vadd.f32 %v1013, %v1053
        %v1055 = vpop.f32.mrf.mxu0
        %v1056 = vadd.f32 %v1015, %v1055
        %v1057 = vpop.f32.mrf.mxu0
        %v1058 = vpop.f32.mrf.mxu0
        %1059 = vdwg.mxu0
        %v1060 = vxor.u32 %v1054, 2147483648
        %v1061 = vxor.u32 %v1056, 2147483648
        %v1062 = vmul.f32 %v1060, 1.442695
        %v1063 = vpow.pop %v1062
        %v1064 = vmul.f32 %v1061, 1.442695
        %v1065 = vpow.pop %v1064
        %v1066 = vadd.f32 %v1063, 1.0
        %v1067 = vadd.f32 %v1065, 1.0
        %v1068 = vrcp.pop %v1066
        %v1069 = vmul.f32 1.0, %v1068
        %v1070 = vrcp.pop %v1067
        %v1071 = vmul.f32 1.0, %v1070
        %v1072 = vlaneseq
        %v1073 = vshrl.u32 %v1072, 7
        %v1074 = vsub.s32 0, %v1073
        %v1075 = vrot.slane %v1069, %v1074
        %v1076 = vlaneseq
        %v1077 = vshrl.u32 %v1076, 7
        %v1078 = vsub.s32 0, %v1077
        %v1079 = vrot.slane %v1071, %v1078
        %v1080 = vmul.f32 %v541, %v1075
        %v1081 = vmul.f32 %v542, %v1079
        %v1082 = vmul.f32 %v543, %v1075
        %v1083 = vmul.f32 %v544, %v1079
        %v1084 = vmul.f32 %v545, %v1075
        %v1085 = vmul.f32 %v546, %v1079
        %v1086 = vmul.f32 %v547, %v1075
        %v1087 = vmul.f32 %v548, %v1079
        %v1088 = vadd.f32 %v1080, %v259
        %v1089 = vadd.f32 %v1081, %v260
        %v1090 = vadd.f32 %v1082, %v261
        %v1091 = vadd.f32 %v1083, %v262
        %v1092 = vadd.f32 %v1084, %v263
        %v1093 = vadd.f32 %v1085, %v264
        %v1094 = vadd.f32 %v1086, %v265
        %v1095 = vadd.f32 %v1087, %v266
        %1096 = vst [vmem:[%s258] sm:$0xff] %v1088
        %1097 = vst [vmem:[%s258 + $0x8] sm:$0xff] %v1089
        %1098 = vst [vmem:[%s258 + $0x10] sm:$0xff] %v1090
        %1099 = vst [vmem:[%s258 + $0x18] sm:$0xff] %v1091
        %1100 = vst [vmem:[%s258 + $0x20] sm:$0xff] %v1092
        %1101 = vst [vmem:[%s258 + $0x28] sm:$0xff] %v1093
        %1102 = vst [vmem:[%s258 + $0x30] sm:$0xff] %v1094
        %1103 = vst [vmem:[%s258 + $0x38] sm:$0xff] %v1095
        %s1104 = sand.u32 %s142, 1
        %s1105 = scalar_lea.sflag [#allocation5], %s1104
        %s1106 = sand.u32 %s142, 1
        %s1107 = smul.addr %s1106, 64
        %s1108 = scalar_lea.vmem [#allocation8], %s1107
        // Predicated region
        $region49: #{tpu_custom_call.1} parent=39 // pred_check
          %p1109 = pneg %p152
        $region50: #{tpu_custom_call.1} parent=39 // pred_check_branch
          %1111 = sbr.rel (%p1109) target = $region52
        $region51: #{tpu_custom_call.1} parent=39 // pred_region
          %s1113 = ssub.s32 1024, 1024
          %1114 = vsyncadd %s1105, %s1113
          %s1115 = smul.addr %s24, 8
          %s1116 = smul.addr %s1115, 128
          %s1117 = scalar_lea.hbm %s5, %s1116
          %s1118 = sshll.u32 %s1108, 4
          %s1119 = int_to_ptr.vmem [resolvable:$true] %s1118
          %1124 = dma.vmem_to_hbm [thread:$0]  %s1119, 1024, %s1117, %s1105, 256, 256, 16
        $region52: #{tpu_custom_call.1} parent=39 // pred_fallthru
          _
      $region40: #{tpu_custom_call.1} parent=5 // pred_fallthru
        _
      %p1125 = scmp.le.s32.totalorder 2, %s19
      // Predicated region
      $region53: #{tpu_custom_call.1} parent=5 // pred_check
        %p1126 = pneg %p1125
      $region54: #{tpu_custom_call.1} parent=5 // pred_check_branch
        %1128 = sbr.rel (%p1126) target = $region56
      $region55: #{tpu_custom_call.1} parent=5 // pred_region
        %s1129 = ssub.s32 %s19, 2
        // Predicated region
        $region57: #{tpu_custom_call.1} parent=55 // pred_check
          %p1130 = pneg %p158
        $region58: #{tpu_custom_call.1} parent=55 // pred_check_branch
          %1132 = sbr.rel (%p1130) target = $region60
        $region59: #{tpu_custom_call.1} parent=55 // pred_region
          %s1133 = sand.u32 %s143, 1
          %s1134 = scalar_lea.sflag [#allocation5], %s1133
          %s1135 = sand.u32 %s143, 1
          %s1136 = smul.addr %s1135, 64
          %s1137 = scalar_lea.vmem [#allocation8], %s1136
          %1138 = dma.done %s1134, 1024
        $region60: #{tpu_custom_call.1} parent=55 // pred_fallthru
          _
      $region56: #{tpu_custom_call.1} parent=5 // pred_fallthru
        _
    $region6: #{tpu_custom_call.1} parent=1 // loop_footer
      %s23 = sadd.s32 1, %s19
    $region7: #{tpu_custom_call.1} parent=1 // loop_footer_branch
      %18 = sbr.rel target = $region3
    $region8: #{tpu_custom_call.1} parent=1 // loop_exit
      _
    %1139 = vsyncpa [#allocation4], 1
    %s1140 = scalar_lea.sflag [#allocation4], 1
    %1141 = vsyncpa %s1140, 1
    %1142 = vsyncpa [#allocation7], 1
    %1143 = vsyncpa [#allocation5], 1
    %s1144 = scalar_lea.sflag [#allocation5], 1
    %1145 = vsyncpa %s1144, 1

</llo_original>
